<compile_context>
chip_gen: v6e
topology: v6e:2x2x1
jax: 0.10.0
libtpu: 0.0.40
codegen_flags: <defaults>
</compile_context>

<pallas_src>
import functools

import jax
import jax.numpy as jnp
from jax.experimental import pallas as pl
from jax.experimental.pallas import tpu as pltpu


def _round_up(x, m):
    return ((x + m - 1) // m) * m


def _cdiv(a, b):
    return (a + b - 1) // b


def _vmem_budgets():
    """Returns (scoped-VMEM limit to request, target logits-tile bytes/step)."""
    try:
        cap = int(pltpu.get_tpu_info().vmem_capacity_bytes)
    except Exception:
        cap = 0
    if cap >= (96 << 20):          # v5e / v6e: 128 MiB VMEM per core
        return 80 << 20, 16 << 20
    # v7x (64 MiB per TC) or unknown: stay conservative.
    return 40 << 20, 8 << 20


def _seq_ce_kernel(logits_ref, targets_ref, out_ref,
                   m_ref, l_ref, t_ref, *s_scratch,
                   label_smoothing, vocab_size, block_vocab, mask_vocab_pad):
    """Grid = (row_tiles, vocab_chunks); vocab axis is the reduction axis.

    Scratch m/l/t/s are lane-wise (Sr, 128) f32 accumulators; only the
    finalize step does a cross-lane reduce.
    """
    smoothing = label_smoothing > 0.0
    s_ref = s_scratch[0] if smoothing else None

    k = pl.program_id(1)
    Sr = logits_ref.shape[0]
    n_groups = block_vocab // 128
    NEG = jnp.float32(-1e30)        # finite sentinel (never -inf: avoids NaN alpha)

    @pl.when(k == 0)
    def _init():
        m_ref[...] = jnp.full(m_ref.shape, NEG, dtype=jnp.float32)
        l_ref[...] = jnp.zeros(l_ref.shape, dtype=jnp.float32)
        t_ref[...] = jnp.zeros(t_ref.shape, dtype=jnp.float32)
        if smoothing:
            s_ref[...] = jnp.zeros(s_ref.shape, dtype=jnp.float32)

    lane = jax.lax.broadcasted_iota(jnp.int32, (Sr, 128), 1)
    chunk_base = k * block_vocab                       # traced scalar
    # Broadcast the (Sr,1) target column across lanes ONCE per chunk; the
    # per-group compares then use chunk-local lane ids (no (Sr,Vc) class-id
    # tensor and no per-group lane broadcasts).
    tgt_rel = jnp.broadcast_to(targets_ref[...], (Sr, 128)) - chunk_base
    vrem = vocab_size - chunk_base                     # valid lanes remaining

    def load_group(g):
        gx = logits_ref[:, g * 128:(g + 1) * 128].astype(jnp.float32)
        if mask_vocab_pad:
            valid = lane < (vrem - g * 128)
            gm = jnp.where(valid, gx, NEG)             # lse path: pad -> -1e30
        else:
            valid = None
            gm = gx
        return gx, gm, valid

    # ---- pass 1 (pure VALU, lane-wise): running max + target / sum gathers ----
    m_prev = m_ref[...]
    m_new = m_prev
    t_acc = t_ref[...]
    s_acc = s_ref[...] if smoothing else None
    for g in range(n_groups):
        gx, gm, valid = load_group(g)
        m_new = jnp.maximum(m_new, gm)
        t_acc = t_acc + jnp.where(tgt_rel == (lane + g * 128), gx, 0.0)
        if smoothing:
            gz = jnp.where(valid, gx, 0.0) if mask_vocab_pad else gx
            s_acc = s_acc + gz

    # ---- pass 2 (VALU + EUP, lane-wise): rescale running sum-exp, add chunk ---
    l_acc = l_ref[...] * jnp.exp(m_prev - m_new)       # alpha == 0 at k == 0
    for g in range(n_groups):
        _, gm, _ = load_group(g)
        l_acc = l_acc + jnp.exp(gm - m_new)

    m_ref[...] = m_new
    l_ref[...] = l_acc
    t_ref[...] = t_acc
    if smoothing:
        s_ref[...] = s_acc

    # ---- finalize: one cross-lane collapse per row tile -----------------------
    @pl.when(k == pl.num_programs(1) - 1)
    def _finalize():
        m_lane = m_ref[...]                                       # (Sr, 128)
        m_tot = jnp.max(m_lane, axis=-1, keepdims=True)           # (Sr, 1)
        l_tot = jnp.sum(l_ref[...] * jnp.exp(m_lane - m_tot),
                        axis=-1, keepdims=True)
        lse = m_tot + jnp.log(l_tot)
        t_tot = jnp.sum(t_ref[...], axis=-1, keepdims=True)
        if smoothing:
            s_tot = jnp.sum(s_ref[...], axis=-1, keepdims=True)
            eps = label_smoothing
            nll = (lse
                   - (1.0 - eps) * t_tot
                   - (eps / float(vocab_size)) * s_tot)
        else:
            nll = lse - t_tot
        out_ref[...] = nll


def sequence_cross_entropy_with_logits(logits, targets, mask,
                                       label_smoothing=-1.0, reduce=None,
                                       block_rows=None, block_vocab=None):
    B, S, V = logits.shape
    N = B * S
    smoothing = float(label_smoothing) > 0.0

    logits2 = logits.reshape(N, V)
    targets2 = targets.astype(jnp.int32).reshape(N, 1)

    # Tiny degenerate-case pads ONLY (a dim smaller than one aligned block);
    # the common ragged vocab / row tails are partial Pallas blocks masked
    # in-kernel — no full extra HBM pass over the logits.
    if V < 128:
        logits2 = jnp.pad(logits2, ((0, 0), (0, 128 - V)))
    if N < 8:
        logits2 = jnp.pad(logits2, ((0, 8 - N), (0, 0)))
        targets2 = jnp.pad(targets2, ((0, 8 - N), (0, 0)))
    Nr, Va = logits2.shape

    itemsize = int(jnp.dtype(logits2.dtype).itemsize)
    vmem_budget, tile_budget = _vmem_budgets()

    # Lane-aligned vocab chunk (grow vocab chunk first; never exceeds Va).
    if block_vocab is not None:
        Vc = max(128, _round_up(int(block_vocab), 128))
    else:
        Vc = max(128, min(8192, (Va // 128) * 128))
    # Sublane-aligned row tile sized so the logits tile hits the per-step budget.
    if block_rows is not None:
        Sr = max(8, _round_up(int(block_rows), 8))
    else:
        rows_fit = max(8, tile_budget // (Vc * itemsize))
        Sr = max(8, min(512, (rows_fit // 8) * 8, (Nr // 8) * 8))
        n_row_tiles = _cdiv(Nr, Sr)
        if n_row_tiles > 1:            # keep row tiles even (megacore balance)
            Sr = max(8, _round_up(_cdiv(Nr, n_row_tiles), 8))

    grid = (_cdiv(Nr, Sr), _cdiv(Va, Vc))
    mask_vocab_pad = (V % Vc) != 0     # only then can a chunk hold invalid lanes

    kernel = functools.partial(
        _seq_ce_kernel,
        label_smoothing=float(label_smoothing),
        vocab_size=V,
        block_vocab=Vc,
        mask_vocab_pad=mask_vocab_pad,
    )

    n_scratch = 4 if smoothing else 3
    scratch_shapes = [pltpu.VMEM((Sr, 128), jnp.float32) for _ in range(n_scratch)]

    # Scoped VMEM: double-buffered logits tile + scratch + margin, per-gen cap.
    tile_bytes = Sr * Vc * itemsize
    scratch_bytes = n_scratch * Sr * 128 * 4
    vmem_limit = int(min(max(2 * tile_bytes + scratch_bytes + (4 << 20),
                             16 << 20),
                         vmem_budget))

    out = pl.pallas_call(
        kernel,
        out_shape=jax.ShapeDtypeStruct((Nr, 1), jnp.float32),
        grid_spec=pltpu.PrefetchScalarGridSpec(
            num_scalar_prefetch=0,
            grid=grid,
            in_specs=[
                # Logits tile; partial last blocks (rows / vocab) are masked in
                # the kernel.  (On v7x a pipeline_mode=pl.Buffered(3) sweep is
                # optional once tiles are large — left at the default depth.)
                pl.BlockSpec((Sr, Vc), lambda i, k: (i, k)),
                pl.BlockSpec((Sr, 1), lambda i, k: (i, 0)),     # targets column
            ],
            out_specs=pl.BlockSpec((Sr, 1), lambda i, k: (i, 0)),
            scratch_shapes=scratch_shapes,
        ),
        compiler_params=pltpu.CompilerParams(
            dimension_semantics=("parallel", "arbitrary"),
            vmem_limit_bytes=vmem_limit),
    )(logits2, targets2)

    nll = out[:N, 0].reshape(B, S)                    # per-token NLL
    mask_f = mask.astype(jnp.float32)
    loss = nll * mask_f
    if reduce:
        loss = loss.sum(axis=1) / (mask_f.sum(axis=1) + 1e-13)   # "sentence"
        if reduce == "batch":
            loss = loss.mean()
    return loss


class SequenceCrossEntropyLoss:
    """JAX/Pallas equivalent of the PyTorch nn.Module (no parameters)."""

    def __call__(self, logits, targets, mask, label_smoothing=-1, reduce=None,
                 **tiling):
        return sequence_cross_entropy_with_logits(
            logits, targets, mask, label_smoothing, reduce, **tiling)


def _reference(logits, targets, mask, label_smoothing, reduce):
    V = logits.shape[-1]
    log_probs = jax.nn.log_softmax(logits.astype(jnp.float32), axis=-1)
    one_hot = jax.nn.one_hot(targets, V, dtype=jnp.float32)
    if label_smoothing > 0.0:
        dist = one_hot * (1.0 - label_smoothing) + label_smoothing / float(V)
    else:
        dist = one_hot
    nll = -jnp.sum(log_probs * dist, axis=-1)
    mask_f = mask.astype(jnp.float32)
    loss = nll * mask_f
    if reduce:
        loss = loss.sum(axis=1) / (mask_f.sum(axis=1) + 1e-13)
        if reduce == "batch":
            loss = loss.mean()
    return loss


if __name__ == "__main__":
    model = SequenceCrossEntropyLoss()
    key = jax.random.PRNGKey(0)
    keys = jax.random.split(key, 9)

    # Case 1: tiny vocab (< 128 lanes), no smoothing, no reduction -> (B, S).
    B, S, V = 2, 8, 32
    logits = jax.random.normal(keys[0], (B, S, V), dtype=jnp.float32)
    targets = jax.random.randint(keys[1], (B, S), 0, V, dtype=jnp.int32)
    mask = (jax.random.uniform(keys[2], (B, S)) > 0.25).astype(jnp.float32)

    loss = model(logits, targets, mask)
    jax.block_until_ready(loss)
    ref = _reference(logits, targets, mask, -1.0, None)
    assert jnp.allclose(loss, ref, atol=1e-4, rtol=1e-4), (loss, ref)

    # Case 2: label smoothing + "batch" reduction; small explicit blocks force
    # multiple row tiles, multiple vocab chunks, and the ragged-vocab tail.
    B2, S2, V2 = 2, 16, 300
    logits_b = 4.0 * jax.random.normal(keys[3], (B2, S2, V2), dtype=jnp.float32)
    targets_b = jax.random.randint(keys[4], (B2, S2), 0, V2, dtype=jnp.int32)
    mask_b = (jax.random.uniform(keys[5], (B2, S2)) > 0.25).astype(jnp.float32)

    loss_b = model(logits_b, targets_b, mask_b, label_smoothing=0.1,
                   reduce="batch", block_rows=8, block_vocab=128)
    jax.block_until_ready(loss_b)
    ref_b = _reference(logits_b, targets_b, mask_b, 0.1, "batch")
    assert jnp.allclose(loss_b, ref_b, atol=1e-4, rtol=1e-4), (loss_b, ref_b)

    # Case 3: bf16 logits, ragged row tail (N=21) and ragged vocab tail (V=520)
    # with default tiling, "sentence" reduction.
    B3, S3, V3 = 3, 7, 520
    logits_c = jax.random.normal(keys[6], (B3, S3, V3), dtype=jnp.bfloat16)
    targets_c = jax.random.randint(keys[7], (B3, S3), 0, V3, dtype=jnp.int32)
    mask_c = (jax.random.uniform(keys[8], (B3, S3)) > 0.25).astype(jnp.float32)

    loss_c = model(logits_c, targets_c, mask_c, reduce="sentence")
    jax.block_until_ready(loss_c)
    ref_c = _reference(logits_c, targets_c, mask_c, -1.0, "sentence")
    assert jnp.allclose(loss_c, ref_c, atol=2e-3, rtol=2e-3), (loss_c, ref_c)

    print("KERNEL_OK")
</pallas_src>

<mosaic_0001>
module attributes {stable_mosaic.version = 11 : i64} {
  func.func @_seq_ce_kernel(%arg0: i32, %arg1: i32, %arg2: memref<16x128xf32, #tpu.memory_space<vmem>>, %arg3: memref<16x1xi32, #tpu.memory_space<vmem>>, %arg4: memref<16x1xf32, #tpu.memory_space<vmem>>, %arg5: memref<16x128xf32, #tpu.memory_space<vmem>>, %arg6: memref<16x128xf32, #tpu.memory_space<vmem>>, %arg7: memref<16x128xf32, #tpu.memory_space<vmem>>) attributes {dimension_semantics = [#tpu.dimension_semantics<parallel>, #tpu.dimension_semantics<arbitrary>], iteration_bounds = array<i64: 1, 1>, scalar_prefetch = 0 : i64, scratch_operands = 3 : i64, tpu.core_type = #tpu.core_type<tc>, window_params = [{transform_indices = @transform_0, window_bounds = array<i64: 16, 128>}, {transform_indices = @transform_1, window_bounds = array<i64: 16, 1>}, {transform_indices = @transform_2, window_bounds = array<i64: 16, 1>}]} {
    %c0_i32 = arith.constant 0 : i32
    %0 = arith.cmpi eq, %arg1, %c0_i32 : i32
    %1 = arith.extui %0 : i1 to i32
    %cst = arith.constant -1.000000e+30 : f32
    %c0_i32_0 = arith.constant 0 : i32
    %2 = arith.cmpi ne, %1, %c0_i32_0 : i32
    scf.if %2 {
      %45 = vector.broadcast %cst : f32 to vector<16x128xf32>
      %c0_26 = arith.constant 0 : index
      %c0_27 = arith.constant 0 : index
      %46 = vector.load %arg5[%c0_26, %c0_27] : memref<16x128xf32, #tpu.memory_space<vmem>>, vector<16x128xf32>
      tpu.vector_store %arg5[%c0_26, %c0_27], %45 {strides = array<i32>} : memref<16x128xf32, #tpu.memory_space<vmem>>, vector<16x128xf32>,
      %cst_28 = arith.constant 0.000000e+00 : f32
      %47 = vector.broadcast %cst_28 : f32 to vector<16x128xf32>
      %c0_29 = arith.constant 0 : index
      %c0_30 = arith.constant 0 : index
      %48 = vector.load %arg6[%c0_29, %c0_30] : memref<16x128xf32, #tpu.memory_space<vmem>>, vector<16x128xf32>
      tpu.vector_store %arg6[%c0_29, %c0_30], %47 {strides = array<i32>} : memref<16x128xf32, #tpu.memory_space<vmem>>, vector<16x128xf32>,
      %cst_31 = arith.constant 0.000000e+00 : f32
      %49 = vector.broadcast %cst_31 : f32 to vector<16x128xf32>
      %c0_32 = arith.constant 0 : index
      %c0_33 = arith.constant 0 : index
      %50 = vector.load %arg7[%c0_32, %c0_33] : memref<16x128xf32, #tpu.memory_space<vmem>>, vector<16x128xf32>
      tpu.vector_store %arg7[%c0_32, %c0_33], %49 {strides = array<i32>} : memref<16x128xf32, #tpu.memory_space<vmem>>, vector<16x128xf32>,
    } else {
    }
    %3 = tpu.iota {dimensions = array<i32: 1>} : vector<16x128xi32>
    %c128_i32 = arith.constant 128 : i32
    %4 = arith.muli %arg1, %c128_i32 : i32
    %c0 = arith.constant 0 : index
    %c0_1 = arith.constant 0 : index
    %5 = vector.load %arg3[%c0, %c0_1] : memref<16x1xi32, #tpu.memory_space<vmem>>, vector<16x1xi32>
    %6 = vector.shape_cast %5 : vector<16x1xi32> to vector<16x1xi32>
    %7 = vector.broadcast %6 : vector<16x1xi32> to vector<16x128xi32>
    %8 = vector.broadcast %4 : i32 to vector<16x128xi32>
    %9 = arith.subi %7, %8 : vector<16x128xi32>
    %c32_i32 = arith.constant 32 : i32
    %10 = arith.subi %c32_i32, %4 : i32
    %c0_2 = arith.constant 0 : index
    %c0_3 = arith.constant 0 : index
    %11 = vector.load %arg5[%c0_2, %c0_3] : memref<16x128xf32, #tpu.memory_space<vmem>>, vector<16x128xf32>
    %c0_4 = arith.constant 0 : index
    %c0_5 = arith.constant 0 : index
    %12 = vector.load %arg7[%c0_4, %c0_5] : memref<16x128xf32, #tpu.memory_space<vmem>>, vector<16x128xf32>
    %c0_6 = arith.constant 0 : index
    %c0_7 = arith.constant 0 : index
    %13 = vector.load %arg2[%c0_6, %c0_7] : memref<16x128xf32, #tpu.memory_space<vmem>>, vector<16x128xf32>
    %c0_i32_8 = arith.constant 0 : i32
    %14 = arith.subi %10, %c0_i32_8 : i32
    %15 = vector.broadcast %14 : i32 to vector<16x128xi32>
    %16 = arith.cmpi slt, %3, %15 : vector<16x128xi32>
    %cst_9 = arith.constant -1.000000e+30 : f32
    %17 = vector.broadcast %cst_9 : f32 to vector<16x128xf32>
    %18 = arith.select %16, %13, %17 : vector<16x128xi1>, vector<16x128xf32>
    %19 = arith.maximumf %11, %18 : vector<16x128xf32>
    %c0_i32_10 = arith.constant 0 : i32
    %20 = vector.broadcast %c0_i32_10 : i32 to vector<16x128xi32>
    %21 = arith.addi %3, %20 : vector<16x128xi32>
    %22 = arith.cmpi eq, %9, %21 : vector<16x128xi32>
    %cst_11 = arith.constant 0.000000e+00 : f32
    %23 = vector.broadcast %cst_11 : f32 to vector<16x128xf32>
    %24 = arith.select %22, %13, %23 : vector<16x128xi1>, vector<16x128xf32>
    %25 = arith.addf %12, %24 : vector<16x128xf32>
    %c0_12 = arith.constant 0 : index
    %c0_13 = arith.constant 0 : index
    %26 = vector.load %arg6[%c0_12, %c0_13] : memref<16x128xf32, #tpu.memory_space<vmem>>, vector<16x128xf32>
    %27 = arith.subf %11, %19 : vector<16x128xf32>
    %28 = math.exp %27 : vector<16x128xf32>
    %29 = arith.mulf %26, %28 : vector<16x128xf32>
    %c0_14 = arith.constant 0 : index
    %c0_15 = arith.constant 0 : index
    %30 = vector.load %arg2[%c0_14, %c0_15] : memref<16x128xf32, #tpu.memory_space<vmem>>, vector<16x128xf32>
    %c0_i32_16 = arith.constant 0 : i32
    %31 = arith.subi %10, %c0_i32_16 : i32
    %32 = vector.broadcast %31 : i32 to vector<16x128xi32>
    %33 = arith.cmpi slt, %3, %32 : vector<16x128xi32>
    %cst_17 = arith.constant -1.000000e+30 : f32
    %34 = vector.broadcast %cst_17 : f32 to vector<16x128xf32>
    %35 = arith.select %33, %30, %34 : vector<16x128xi1>, vector<16x128xf32>
    %36 = arith.subf %35, %19 : vector<16x128xf32>
    %37 = math.exp %36 : vector<16x128xf32>
    %38 = arith.addf %29, %37 : vector<16x128xf32>
    %c0_18 = arith.constant 0 : index
    %c0_19 = arith.constant 0 : index
    %39 = vector.load %arg5[%c0_18, %c0_19] : memref<16x128xf32, #tpu.memory_space<vmem>>, vector<16x128xf32>
    tpu.vector_store %arg5[%c0_18, %c0_19], %19 {strides = array<i32>} : memref<16x128xf32, #tpu.memory_space<vmem>>, vector<16x128xf32>,
    %c0_20 = arith.constant 0 : index
    %c0_21 = arith.constant 0 : index
    %40 = vector.load %arg6[%c0_20, %c0_21] : memref<16x128xf32, #tpu.memory_space<vmem>>, vector<16x128xf32>
    tpu.vector_store %arg6[%c0_20, %c0_21], %38 {strides = array<i32>} : memref<16x128xf32, #tpu.memory_space<vmem>>, vector<16x128xf32>,
    %c0_22 = arith.constant 0 : index
    %c0_23 = arith.constant 0 : index
    %41 = vector.load %arg7[%c0_22, %c0_23] : memref<16x128xf32, #tpu.memory_space<vmem>>, vector<16x128xf32>
    tpu.vector_store %arg7[%c0_22, %c0_23], %25 {strides = array<i32>} : memref<16x128xf32, #tpu.memory_space<vmem>>, vector<16x128xf32>,
    %c0_i32_24 = arith.constant 0 : i32
    %42 = arith.cmpi eq, %arg1, %c0_i32_24 : i32
    %43 = arith.extui %42 : i1 to i32
    %c0_i32_25 = arith.constant 0 : i32
    %44 = arith.cmpi ne, %43, %c0_i32_25 : i32
    scf.if %44 {
      %c0_26 = arith.constant 0 : index
      %c0_27 = arith.constant 0 : index
      %45 = vector.load %arg5[%c0_26, %c0_27] : memref<16x128xf32, #tpu.memory_space<vmem>>, vector<16x128xf32>
      %cst_28 = arith.constant dense<0xFF800000> : vector<16xf32>
      %46 = vector.multi_reduction <maximumf>, %45, %cst_28 [1] : vector<16x128xf32> to vector<16xf32>
      %47 = vector.shape_cast %46 : vector<16xf32> to vector<16x1xf32>
      %c0_29 = arith.constant 0 : index
      %c0_30 = arith.constant 0 : index
      %48 = vector.load %arg6[%c0_29, %c0_30] : memref<16x128xf32, #tpu.memory_space<vmem>>, vector<16x128xf32>
      %49 = vector.broadcast %47 : vector<16x1xf32> to vector<16x128xf32>
      %50 = arith.subf %45, %49 : vector<16x128xf32>
      %51 = math.exp %50 : vector<16x128xf32>
      %52 = arith.mulf %48, %51 : vector<16x128xf32>
      %cst_31 = arith.constant dense<0.000000e+00> : vector<16xf32>
      %53 = vector.multi_reduction <add>, %52, %cst_31 [1] : vector<16x128xf32> to vector<16xf32>
      %54 = vector.shape_cast %53 : vector<16xf32> to vector<16x1xf32>
      %55 = math.log %54 : vector<16x1xf32>
      %56 = arith.addf %47, %55 : vector<16x1xf32>
      %c0_32 = arith.constant 0 : index
      %c0_33 = arith.constant 0 : index
      %57 = vector.load %arg7[%c0_32, %c0_33] : memref<16x128xf32, #tpu.memory_space<vmem>>, vector<16x128xf32>
      %cst_34 = arith.constant dense<0.000000e+00> : vector<16xf32>
      %58 = vector.multi_reduction <add>, %57, %cst_34 [1] : vector<16x128xf32> to vector<16xf32>
      %59 = vector.shape_cast %58 : vector<16xf32> to vector<16x1xf32>
      %60 = arith.subf %56, %59 : vector<16x1xf32>
      %c0_35 = arith.constant 0 : index
      %c0_36 = arith.constant 0 : index
      %61 = vector.load %arg4[%c0_35, %c0_36] : memref<16x1xf32, #tpu.memory_space<vmem>>, vector<16x1xf32>
      tpu.vector_store %arg4[%c0_35, %c0_36], %60 {strides = array<i32>} : memref<16x1xf32, #tpu.memory_space<vmem>>, vector<16x1xf32>,
    } else {
    }
    return
  }
  func.func @transform_0(%arg0: i32, %arg1: i32) -> (i32, i32) {
    %c0_i32 = arith.constant 0 : i32
    return %arg0, %arg1 : i32, i32
  }
  func.func @transform_1(%arg0: i32, %arg1: i32) -> (i32, i32) {
    %c0_i32 = arith.constant 0 : i32
    %c0_i32_0 = arith.constant 0 : i32
    return %arg0, %c0_i32 : i32, i32
  }
  func.func @transform_2(%arg0: i32, %arg1: i32) -> (i32, i32) {
    %c0_i32 = arith.constant 0 : i32
    %c0_i32_0 = arith.constant 0 : i32
    return %arg0, %c0_i32 : i32, i32
  }
}

</mosaic_0001>

<llo_original>
// kernel: tpu_custom_call.1
$region0: #{tpu_custom_call.1}
  #allocation0 [shape = 'u32[]', space=smem, size = 0x4, offset = 0x4, fixed_abs, tag = 'smem constant byte address 0x4 - core index']
  #allocation1 [shape = 'u32[144,128]{1,0:T(1,128)}', space=vmem, size = 0x12000, scoped, tag = 'internal scratch']
  #allocation2 [shape = 'f32[16,128]{1,0:T(8,128)}', space=vmem, size = 0x2000, scoped, tag = 'scratch operand']
  #allocation3 [shape = 'f32[16,128]{1,0:T(8,128)}', space=vmem, size = 0x2000, scoped, tag = 'scratch operand']
  #allocation4 [shape = 'f32[16,128]{1,0:T(8,128)}', space=vmem, size = 0x2000, scoped, tag = 'scratch operand']
  %s0 = inlined_call_operand.vmem [shape: f32[16,128], index: 0, kind: input, shape index: {}]
  %s1 = inlined_call_operand.vmem [shape: s32[16,1], index: 1, kind: input, shape index: {}]
  %s2 = inlined_call_operand.vmem [shape: f32[16,1], index: 2, kind: output, shape index: {}]
  %s3 = sld [smem:[#allocation0]]
  $region26: #{tpu_custom_call.1} parent=0
    _
  %s5 = ssub.s32 1, %s3
  %s6 = scalar_select 0, %s5, %s3
  // Predicated region
  $region2: #{tpu_custom_call.1} parent=0 // pred_check
    _
  $region3: #{tpu_custom_call.1} parent=0 // pred_check_branch
    %8 = sbr.rel (0) target = $region5
  $region4: #{tpu_custom_call.1} parent=0 // pred_region
    _
  $region5: #{tpu_custom_call.1} parent=0 // pred_fallthru
    _
  // Predicated region
  $region6: #{tpu_custom_call.1} parent=0 // pred_check
    _
  $region7: #{tpu_custom_call.1} parent=0 // pred_check_branch
    %10 = sbr.rel (0) target = $region9
  $region8: #{tpu_custom_call.1} parent=0 // pred_region
    _
  $region9: #{tpu_custom_call.1} parent=0 // pred_fallthru
    _
  %p11 = scmp.eq.s32.totalorder 0, 0
  // Predicated region
  $region10: #{tpu_custom_call.1} parent=0 // pred_check
    %p12 = pneg %p11
  $region11: #{tpu_custom_call.1} parent=0 // pred_check_branch
    %14 = sbr.rel (%p12) target = $region13
  $region12: #{tpu_custom_call.1} parent=0 // pred_region
    %15 = vst [vmem:[#allocation2] sm:$0xff] -1e+30
    %16 = vst [vmem:[#allocation2 + $0x8] sm:$0xff] -1e+30
    %17 = vst [vmem:[#allocation3] sm:$0xff] 0.0
    %18 = vst [vmem:[#allocation3 + $0x8] sm:$0xff] 0.0
    %19 = vst [vmem:[#allocation4] sm:$0xff] 0.0
    %20 = vst [vmem:[#allocation4 + $0x8] sm:$0xff] 0.0
  $region13: #{tpu_custom_call.1} parent=0 // pred_fallthru
    _
  %v21 = vlaneseq
  %v22 = vand.u32 %v21, 127
  %s23 = smul.u32 0, 128
  %v24 = vld [vmem:[%s1] sm:$0xff]
  %v25 = vld [vmem:[%s1 + $0x8] sm:$0xff]
  %26 = vset.pattern.permute.xlu0 0
  %27 = vperm.xlu0 %26, %v24
  %v28 = vpop.permute.xlu0 %27
  %29 = vset.pattern.permute.xlu0 0
  %30 = vperm.xlu0 %29, %v25
  %v31 = vpop.permute.xlu0 %30
  %v32 = vstv %s23
  %v33 = vsub.s32 %v28, %v32
  %v34 = vsub.s32 %v31, %v32
  %s35 = ssub.s32 32, %s23
  %v36 = vld [vmem:[#allocation2] sm:$0xff]
  %v37 = vld [vmem:[#allocation2 + $0x8] sm:$0xff]
  %v38 = vld [vmem:[#allocation4] sm:$0xff]
  %v39 = vld [vmem:[#allocation4 + $0x8] sm:$0xff]
  %v40 = vld [vmem:[%s0] sm:$0xff]
  %v41 = vld [vmem:[%s0 + $0x8] sm:$0xff]
  %v42 = vstv %s35
  %vm43 = vcmp.lt.s32.totalorder %v22, %v42
  %v44 = vsel %vm43, %v40, -1e+30
  %v45 = vsel %vm43, %v41, -1e+30
  %v46 = vmax.f32 %v36, %v44
  %v47 = vmax.f32 %v37, %v45
  %vm48 = vcmp.eq.s32.totalorder %v33, %v22
  %vm49 = vcmp.eq.s32.totalorder %v34, %v22
  %v50 = vsel %vm48, %v40, 0.0
  %v51 = vsel %vm49, %v41, 0.0
  %v52 = vadd.f32 %v38, %v50
  %v53 = vadd.f32 %v39, %v51
  %v54 = vld [vmem:[#allocation3] sm:$0xff]
  %v55 = vld [vmem:[#allocation3 + $0x8] sm:$0xff]
  %v56 = vsub.f32 %v36, %v46
  %v57 = vsub.f32 %v37, %v47
  %v58 = vmul.f32 %v56, 1.442695
  %v59 = vpow.pop %v58
  %v60 = vmul.f32 %v57, 1.442695
  %v61 = vpow.pop %v60
  %v62 = vmul.f32 %v54, %v59
  %v63 = vmul.f32 %v55, %v61
  %v64 = vsub.f32 %v44, %v46
  %v65 = vsub.f32 %v45, %v47
  %v66 = vmul.f32 %v64, 1.442695
  %v67 = vpow.pop %v66
  %v68 = vmul.f32 %v65, 1.442695
  %v69 = vpow.pop %v68
  %v70 = vadd.f32 %v62, %v67
  %v71 = vadd.f32 %v63, %v69
  %72 = vst [vmem:[#allocation2] sm:$0xff] %v46
  %73 = vst [vmem:[#allocation2 + $0x8] sm:$0xff] %v47
  %74 = vst [vmem:[#allocation3] sm:$0xff] %v70
  %75 = vst [vmem:[#allocation3 + $0x8] sm:$0xff] %v71
  %76 = vst [vmem:[#allocation4] sm:$0xff] %v52
  %77 = vst [vmem:[#allocation4 + $0x8] sm:$0xff] %v53
  // Predicated region
  $region14: #{tpu_custom_call.1} parent=0 // pred_check
    %p78 = pneg %p11
  $region15: #{tpu_custom_call.1} parent=0 // pred_check_branch
    %80 = sbr.rel (%p78) target = $region17
  $region16: #{tpu_custom_call.1} parent=0 // pred_region
    %v81 = vld [vmem:[#allocation2] sm:$0xff]
    %v82 = vld [vmem:[#allocation2 + $0x8] sm:$0xff]
    %83 = vmax.xlane.f32.xlu0 %v81
    %v84 = vpop.xlane.xlu0 %83
    %85 = vmax.xlane.f32.xlu0 %v82
    %v86 = vpop.xlane.xlu0 %85
    %v87 = vld [vmem:[#allocation3] sm:$0xff]
    %v88 = vld [vmem:[#allocation3 + $0x8] sm:$0xff]
    %v89 = vsub.f32 %v81, %v84
    %v90 = vsub.f32 %v82, %v86
    %v91 = vmul.f32 %v89, 1.442695
    %v92 = vpow.pop %v91
    %v93 = vmul.f32 %v90, 1.442695
    %v94 = vpow.pop %v93
    %v95 = vmul.f32 %v87, %v92
    %v96 = vmul.f32 %v88, %v94
    %97 = vadd.xlane.f32.xlu0 %v95
    %v98 = vpop.xlane.xlu0 %97
    %99 = vadd.xlane.f32.xlu0 %v96
    %v100 = vpop.xlane.xlu0 %99
    %v101 = vlog2.pop %v98
    %v102 = vmul.f32 %v101, 0.6931472
    %v103 = vlog2.pop %v100
    %v104 = vmul.f32 %v103, 0.6931472
    %v105 = vadd.f32 %v84, %v102
    %v106 = vadd.f32 %v86, %v104
    %v107 = vld [vmem:[#allocation4] sm:$0xff]
    %v108 = vld [vmem:[#allocation4 + $0x8] sm:$0xff]
    %109 = vadd.xlane.f32.xlu0 %v107
    %v110 = vpop.xlane.xlu0 %109
    %111 = vadd.xlane.f32.xlu0 %v108
    %v112 = vpop.xlane.xlu0 %111
    %v113 = vsub.f32 %v105, %v110
    %v114 = vsub.f32 %v106, %v112
    %vm115 = vcmask 7168
    %116 = vst.msk [vmem:[%s2] sm:$0xff] %vm115, %v113
    %117 = vst.msk [vmem:[%s2 + $0x8] sm:$0xff] %vm115, %v114
  $region17: #{tpu_custom_call.1} parent=0 // pred_fallthru
    _
  // Predicated region
  $region18: #{tpu_custom_call.1} parent=0 // pred_check
    _
  $region19: #{tpu_custom_call.1} parent=0 // pred_check_branch
    %119 = sbr.rel (0) target = $region21
  $region20: #{tpu_custom_call.1} parent=0 // pred_region
    _
  $region21: #{tpu_custom_call.1} parent=0 // pred_fallthru
    _
  // Predicated region
  $region22: #{tpu_custom_call.1} parent=0 // pred_check
    _
  $region23: #{tpu_custom_call.1} parent=0 // pred_check_branch
    %121 = sbr.rel (0) target = $region25
  $region24: #{tpu_custom_call.1} parent=0 // pred_region
    _
  $region25: #{tpu_custom_call.1} parent=0 // pred_fallthru
    _

</llo_original>
